<compile_context>
chip_gen: v5e
topology: v5e:2x2
jax: 0.10.0
libtpu: 0.0.40
codegen_flags: <defaults>
</compile_context>

<pallas_src>
import jax
import jax.numpy as jnp
from jax.experimental import pallas as pl
from jax.experimental.pallas import tpu as pltpu


def _sigmoid(z):
    # Exactly sigmoid(z); one EUP transcendental (tanh) + cheap VPU mul/add.
    return 0.5 * jnp.tanh(0.5 * z) + 0.5


def mlp_kernel(x_ref, w1_ref, b1_ref, w2_ref, b2_ref, o_ref):
    """One batch tile.

    x_ref  : (tb, 10) f32  -- streamed / double-buffered per grid step
    w1_ref : (10, 20) f32  -- VMEM-resident (constant index_map)
    b1_ref : (1, 20)  f32  -- resident
    w2_ref : (20, 10) f32  -- resident
    b2_ref : (1, 10)  f32  -- resident
    o_ref  : (tb, 10) f32  -- narrow logical output (masked stores; kernel is HBM-bound)
    """
    # In-kernel bf16 casts: no extra HBM passes, halves MXU passes vs f32xf32.
    x = x_ref[...].astype(jnp.bfloat16)
    w1 = w1_ref[...].astype(jnp.bfloat16)
    h = jnp.dot(x, w1, preferred_element_type=jnp.float32)
    h = _sigmoid(h + b1_ref[...])                       # f32 elementwise (v5e-safe)

    w2 = w2_ref[...].astype(jnp.bfloat16)
    y = jnp.dot(h.astype(jnp.bfloat16), w2, preferred_element_type=jnp.float32)
    o_ref[...] = _sigmoid(y + b2_ref[...]).astype(o_ref.dtype)


def neural_network_forward(x, w1, b1, w2, b2, *, block_rows=2048):
    """Forward pass of the 2-layer MLP.

    x: [B, 10] f32.  Weights stored as [in, out] (i.e. PyTorch W.T):
    w1: [10, 20], b1: [1, 20], w2: [20, 10], b2: [1, 10].  Returns [B, 10] f32.
    """
    B, in_f = x.shape
    hidden = w1.shape[1]
    out_f = w2.shape[1]

    if B <= block_rows:
        tb = B                               # single block == full dim: always legal
    else:
        tb = max((block_rows // 8) * 8, 8)   # multiple of the 8-row sublane granule
    grid = (pl.cdiv(B, tb),)                 # Pallas clips the partial last block

    cost = pl.CostEstimate(
        flops=2 * B * (in_f * hidden + hidden * out_f),
        transcendentals=B * (hidden + out_f),
        bytes_accessed=4 * (x.size + B * out_f + w1.size + b1.size + w2.size + b2.size),
    )

    return pl.pallas_call(
        mlp_kernel,
        out_shape=jax.ShapeDtypeStruct((B, out_f), jnp.float32),
        grid_spec=pltpu.PrefetchScalarGridSpec(
            num_scalar_prefetch=0,
            grid=grid,
            in_specs=[
                pl.BlockSpec((tb, in_f), lambda i: (i, 0)),       # x: streamed
                pl.BlockSpec((in_f, hidden), lambda i: (0, 0)),   # W1: fetched once, resident
                pl.BlockSpec((1, hidden), lambda i: (0, 0)),      # b1: resident
                pl.BlockSpec((hidden, out_f), lambda i: (0, 0)),  # W2: resident
                pl.BlockSpec((1, out_f), lambda i: (0, 0)),       # b2: resident
            ],
            out_specs=pl.BlockSpec((tb, out_f), lambda i: (i, 0)),
        ),
        compiler_params=pltpu.CompilerParams(
            # Independent batch tiles -> shard the grid across TensorCores.
            dimension_semantics=("parallel",),
        ),
        cost_estimate=cost,
    )(x, w1, b1, w2, b2)


def init_params(key):
    """Deterministic init mirroring nn.Linear's U(-1/sqrt(fan_in), 1/sqrt(fan_in))."""
    k1, k2, k3, k4 = jax.random.split(key, 4)
    bound1 = 1.0 / jnp.sqrt(10.0)
    bound2 = 1.0 / jnp.sqrt(20.0)
    # Stored as [in, out] (transposed relative to PyTorch's [out, in]).
    w1 = jax.random.uniform(k1, (10, 20), jnp.float32, -bound1, bound1)
    b1 = jax.random.uniform(k2, (1, 20), jnp.float32, -bound1, bound1)
    w2 = jax.random.uniform(k3, (20, 10), jnp.float32, -bound2, bound2)
    b2 = jax.random.uniform(k4, (1, 10), jnp.float32, -bound2, bound2)
    return w1, b1, w2, b2


def reference_forward(x, w1, b1, w2, b2, *, quantize=False):
    """Pure-JAX reference.  quantize=True mimics the kernel's bf16 MXU operands."""
    f32 = jnp.float32
    if quantize:
        x = x.astype(jnp.bfloat16)
        w1 = w1.astype(jnp.bfloat16)
    h = jax.nn.sigmoid(jnp.dot(x, w1, preferred_element_type=f32) + b1)
    if quantize:
        h = h.astype(jnp.bfloat16)
        w2 = w2.astype(jnp.bfloat16)
    return jax.nn.sigmoid(jnp.dot(h, w2, preferred_element_type=f32) + b2)


if __name__ == "__main__":
    key = jax.random.PRNGKey(0)
    kx, kp = jax.random.split(key)
    w1, b1, w2, b2 = init_params(kp)

    # Two configs: tiny single-block batch, and a multi-tile grid with a partial
    # last block (600 rows, 256-row tiles -> grid of 3, last block clipped).
    for batch, block_rows in ((8, 2048), (600, 256)):
        x = jax.random.normal(jax.random.fold_in(kx, batch), (batch, 10), jnp.float32)

        out = neural_network_forward(x, w1, b1, w2, b2, block_rows=block_rows)
        out = jax.block_until_ready(out)
        assert out.shape == (batch, 10)

        # Tight check against the same bf16-operand math the kernel performs.
        ref_q = reference_forward(x, w1, b1, w2, b2, quantize=True)
        err_q = float(jnp.max(jnp.abs(out - ref_q)))
        assert err_q < 1e-3, err_q

        # Loose check against the pure-f32 PyTorch-semantics forward.
        ref = reference_forward(x, w1, b1, w2, b2)
        err = float(jnp.max(jnp.abs(out - ref)))
        assert err < 5e-2, err

    print("KERNEL_OK")
</pallas_src>

<mosaic_0001>
module attributes {stable_mosaic.version = 11 : i64} {
  func.func @mlp_kernel(%arg0: i32, %arg1: memref<8x10xf32, #tpu.memory_space<vmem>>, %arg2: memref<10x20xf32, #tpu.memory_space<vmem>>, %arg3: memref<1x20xf32, #tpu.memory_space<vmem>>, %arg4: memref<20x10xf32, #tpu.memory_space<vmem>>, %arg5: memref<1x10xf32, #tpu.memory_space<vmem>>, %arg6: memref<8x10xf32, #tpu.memory_space<vmem>>) attributes {dimension_semantics = [#tpu.dimension_semantics<parallel>], iteration_bounds = array<i64: 1>, scalar_prefetch = 0 : i64, scratch_operands = 0 : i64, tpu.core_type = #tpu.core_type<tc>, window_params = [{transform_indices = @transform_0, window_bounds = array<i64: 8, 10>}, {pipeline_mode = #tpu.pipeline_mode<synchronous>, transform_indices = @transform_1, window_bounds = array<i64: 10, 20>}, {pipeline_mode = #tpu.pipeline_mode<synchronous>, transform_indices = @transform_2, window_bounds = array<i64: 1, 20>}, {pipeline_mode = #tpu.pipeline_mode<synchronous>, transform_indices = @transform_3, window_bounds = array<i64: 20, 10>}, {pipeline_mode = #tpu.pipeline_mode<synchronous>, transform_indices = @transform_4, window_bounds = array<i64: 1, 10>}, {transform_indices = @transform_5, window_bounds = array<i64: 8, 10>}]} {
    %c0 = arith.constant 0 : index
    %c0_0 = arith.constant 0 : index
    %0 = vector.load %arg1[%c0, %c0_0] : memref<8x10xf32, #tpu.memory_space<vmem>>, vector<8x10xf32>
    %1 = arith.truncf %0 : vector<8x10xf32> to vector<8x10xbf16>
    %c0_1 = arith.constant 0 : index
    %c0_2 = arith.constant 0 : index
    %2 = vector.load %arg2[%c0_1, %c0_2] : memref<10x20xf32, #tpu.memory_space<vmem>>, vector<10x20xf32>
    %3 = arith.truncf %2 : vector<10x20xf32> to vector<10x20xbf16>
    %cst = arith.constant dense<0.000000e+00> : vector<8x20xf32>
    %4 = tpu.matmul %1, %3, %cst {dimension_numbers = #tpu.dot_dimension_numbers<[1], [0], [0], [1], [0, 0, 1, 1], [], []>} : vector<8x10xbf16>, vector<10x20xbf16>, vector<8x20xf32> -> vector<8x20xf32>
    %c0_3 = arith.constant 0 : index
    %c0_4 = arith.constant 0 : index
    %5 = vector.load %arg3[%c0_3, %c0_4] : memref<1x20xf32, #tpu.memory_space<vmem>>, vector<1x20xf32>
    %6 = vector.broadcast %5 : vector<1x20xf32> to vector<8x20xf32>
    %7 = arith.addf %4, %6 : vector<8x20xf32>
    %cst_5 = arith.constant 5.000000e-01 : f32
    %8 = vector.broadcast %cst_5 : f32 to vector<8x20xf32>
    %9 = arith.mulf %8, %7 : vector<8x20xf32>
    %10 = math.tanh %9 : vector<8x20xf32>
    %cst_6 = arith.constant 5.000000e-01 : f32
    %11 = vector.broadcast %cst_6 : f32 to vector<8x20xf32>
    %12 = arith.mulf %11, %10 : vector<8x20xf32>
    %cst_7 = arith.constant 5.000000e-01 : f32
    %13 = vector.broadcast %cst_7 : f32 to vector<8x20xf32>
    %14 = arith.addf %12, %13 : vector<8x20xf32>
    %c0_8 = arith.constant 0 : index
    %c0_9 = arith.constant 0 : index
    %15 = vector.load %arg4[%c0_8, %c0_9] : memref<20x10xf32, #tpu.memory_space<vmem>>, vector<20x10xf32>
    %16 = arith.truncf %15 : vector<20x10xf32> to vector<20x10xbf16>
    %17 = arith.truncf %14 : vector<8x20xf32> to vector<8x20xbf16>
    %cst_10 = arith.constant dense<0.000000e+00> : vector<8x10xf32>
    %18 = tpu.matmul %17, %16, %cst_10 {dimension_numbers = #tpu.dot_dimension_numbers<[1], [0], [0], [1], [0, 0, 1, 1], [], []>} : vector<8x20xbf16>, vector<20x10xbf16>, vector<8x10xf32> -> vector<8x10xf32>
    %c0_11 = arith.constant 0 : index
    %c0_12 = arith.constant 0 : index
    %19 = vector.load %arg5[%c0_11, %c0_12] : memref<1x10xf32, #tpu.memory_space<vmem>>, vector<1x10xf32>
    %20 = vector.broadcast %19 : vector<1x10xf32> to vector<8x10xf32>
    %21 = arith.addf %18, %20 : vector<8x10xf32>
    %cst_13 = arith.constant 5.000000e-01 : f32
    %22 = vector.broadcast %cst_13 : f32 to vector<8x10xf32>
    %23 = arith.mulf %22, %21 : vector<8x10xf32>
    %24 = math.tanh %23 : vector<8x10xf32>
    %cst_14 = arith.constant 5.000000e-01 : f32
    %25 = vector.broadcast %cst_14 : f32 to vector<8x10xf32>
    %26 = arith.mulf %25, %24 : vector<8x10xf32>
    %cst_15 = arith.constant 5.000000e-01 : f32
    %27 = vector.broadcast %cst_15 : f32 to vector<8x10xf32>
    %28 = arith.addf %26, %27 : vector<8x10xf32>
    %c0_16 = arith.constant 0 : index
    %c0_17 = arith.constant 0 : index
    %29 = vector.load %arg6[%c0_16, %c0_17] : memref<8x10xf32, #tpu.memory_space<vmem>>, vector<8x10xf32>
    tpu.vector_store %arg6[%c0_16, %c0_17], %28 {strides = array<i32>} : memref<8x10xf32, #tpu.memory_space<vmem>>, vector<8x10xf32>,
    return
  }
  func.func @transform_0(%arg0: i32) -> (i32, i32) {
    %c0_i32 = arith.constant 0 : i32
    %c0_i32_0 = arith.constant 0 : i32
    return %arg0, %c0_i32 : i32, i32
  }
  func.func @transform_1(%arg0: i32) -> (i32, i32) {
    %c0_i32 = arith.constant 0 : i32
    %c0_i32_0 = arith.constant 0 : i32
    %c0_i32_1 = arith.constant 0 : i32
    return %c0_i32, %c0_i32_0 : i32, i32
  }
  func.func @transform_2(%arg0: i32) -> (i32, i32) {
    %c0_i32 = arith.constant 0 : i32
    %c0_i32_0 = arith.constant 0 : i32
    %c0_i32_1 = arith.constant 0 : i32
    return %c0_i32, %c0_i32_0 : i32, i32
  }
  func.func @transform_3(%arg0: i32) -> (i32, i32) {
    %c0_i32 = arith.constant 0 : i32
    %c0_i32_0 = arith.constant 0 : i32
    %c0_i32_1 = arith.constant 0 : i32
    return %c0_i32, %c0_i32_0 : i32, i32
  }
  func.func @transform_4(%arg0: i32) -> (i32, i32) {
    %c0_i32 = arith.constant 0 : i32
    %c0_i32_0 = arith.constant 0 : i32
    %c0_i32_1 = arith.constant 0 : i32
    return %c0_i32, %c0_i32_0 : i32, i32
  }
  func.func @transform_5(%arg0: i32) -> (i32, i32) {
    %c0_i32 = arith.constant 0 : i32
    %c0_i32_0 = arith.constant 0 : i32
    return %arg0, %c0_i32 : i32, i32
  }
}

</mosaic_0001>

<llo_original>
// kernel: tpu_custom_call.1
$region0: #{tpu_custom_call.1}
  #allocation0 [shape = 'u32[]', space=smem, size = 0x4, offset = 0x4, fixed_abs, tag = 'smem constant byte address 0x4 - core index']
  #allocation1 [shape = 'u32[72,128]{1,0:T(1,128)}', space=vmem, size = 0x9000, scoped, tag = 'internal scratch']
  %s0 = inlined_call_operand.vmem [shape: f32[8,10], index: 0, kind: input, shape index: {}]
  %s1 = inlined_call_operand.vmem [shape: f32[10,20], index: 1, kind: input, shape index: {}]
  %s2 = inlined_call_operand.vmem [shape: f32[1,20], index: 2, kind: input, shape index: {}]
  %s3 = inlined_call_operand.vmem [shape: f32[20,10], index: 3, kind: input, shape index: {}]
  %s4 = inlined_call_operand.vmem [shape: f32[1,10], index: 4, kind: input, shape index: {}]
  %s5 = inlined_call_operand.hbm [shape: f32[8,10], index: 5, kind: output, shape index: {}]
  %s6 = sld [smem:[#allocation0]]
  $region30: #{tpu_custom_call.1} parent=0
    _
  %s8 = ssub.s32 1, %s6
  %s9 = scalar_select 0, %s8, %s6
  $region1: #{tpu_custom_call.1} parent=0
    #allocation2 [shape = 'u8[4096]{0}', space=vmem, size = 0x1000, scoped, tag = 'output window, operand 0, single buffered']
    #allocation3 [shape = 's32[1]{0}', space=sflag, size = 0x4, scoped, tag = 'scoped memory for tpu_custom_call.1']
    %10 = vsyncpa [#allocation3], 0
    // Predicated region
    $region2: #{tpu_custom_call.1} parent=1 // pred_check
      _
    $region3: #{tpu_custom_call.1} parent=1 // pred_check_branch
      %12 = sbr.rel (0) target = $region5
    $region4: #{tpu_custom_call.1} parent=1 // pred_region
      _
    $region5: #{tpu_custom_call.1} parent=1 // pred_fallthru
      _
    // Predicated region
    $region6: #{tpu_custom_call.1} parent=1 // pred_check
      _
    $region7: #{tpu_custom_call.1} parent=1 // pred_check_branch
      %14 = sbr.rel (0) target = $region9
    $region8: #{tpu_custom_call.1} parent=1 // pred_region
      _
    $region9: #{tpu_custom_call.1} parent=1 // pred_fallthru
      _
    // Predicated region
    $region10: #{tpu_custom_call.1} parent=1 // pred_check
      _
    $region11: #{tpu_custom_call.1} parent=1 // pred_check_branch
      %16 = sbr.rel (0) target = $region13
    $region12: #{tpu_custom_call.1} parent=1 // pred_region
      _
    $region13: #{tpu_custom_call.1} parent=1 // pred_fallthru
      _
    // Predicated region
    $region14: #{tpu_custom_call.1} parent=1 // pred_check
      _
    $region15: #{tpu_custom_call.1} parent=1 // pred_check_branch
      %18 = sbr.rel (0) target = $region17
    $region16: #{tpu_custom_call.1} parent=1 // pred_region
      _
    $region17: #{tpu_custom_call.1} parent=1 // pred_fallthru
      _
    // Predicated region
    $region18: #{tpu_custom_call.1} parent=1 // pred_check
      _
    $region19: #{tpu_custom_call.1} parent=1 // pred_check_branch
      %20 = sbr.rel (0) target = $region21
    $region20: #{tpu_custom_call.1} parent=1 // pred_region
      _
    $region21: #{tpu_custom_call.1} parent=1 // pred_fallthru
      _
    %v22 = vld [vmem:[%s0] sm:$0xff]
    %v23 = vpack.c.bf16 %v22, %v22
    %v24 = vld [vmem:[%s1] sm:$0xff]
    %v25 = vld [vmem:[%s1 + $0x8] sm:$0x3]
    %v26 = vpack.c.bf16 %v25, %v24
    %v27 = vld [vmem:[%s2] sm:$0x1]
    %v29 = vperm.slane %v27, 0
    %vm31 = vcmask 80896
    %v33 = vsel %vm31, %v23, 0
    %vm35 = vcmask 1044480
    %v37 = vsel %vm35, %v26, 0
    %39 = vmatpush.bf16.msra.mxu0 0
    %40 = vmatpush.bf16.msra.mxu0 0
    %41 = vmatpush.bf16.msra.mxu0 0
    %42 = vmatpush.bf16.msra.mxu0 0
    %43 = vmatpush.bf16.msra.mxu0 0
    %44 = vmatpush.bf16.msra.mxu0 0
    %45 = vmatpush.bf16.msra.mxu0 0
    %46 = vmatpush.bf16.msra.mxu0 %v37
    %47 = vmatmul.bf16.gmra.mxu0 %v33
    %v48 = vpop.f32.mrf.mxu0
    %v49 = vadd.f32 %v29, %v48
    %v50 = vpop.f32.mrf.mxu0
    %51 = vdwg.mxu0
    %v52 = vmul.f32 %v49, 0.5
    %v53 = vtanh.pop %v52
    %v54 = vmul.f32 %v53, 0.5
    %v55 = vadd.f32 %v54, 0.5
    %v56 = vld [vmem:[%s3] sm:$0xff]
    %v57 = vld [vmem:[%s3 + $0x8] sm:$0xff]
    %v58 = vld [vmem:[%s3 + $0x10] sm:$0xf]
    %v59 = vpack.c.bf16 %v57, %v56
    %v60 = vpack.c.bf16 %v58, %v58
    %v61 = vpack.c.bf16 %v55, %v55
    %v62 = vld [vmem:[%s4] sm:$0x1]
    %v64 = vperm.slane %v62, 0
    %vm66 = vcmask 162816
    %v68 = vsel %vm66, %v61, 0
    %vm70 = vcmask 1041408
    %v72 = vsel %vm70, %v60, 0
    %74 = vmatpush.bf16.msra.mxu0 0
    %75 = vmatpush.bf16.msra.mxu0 0
    %76 = vmatpush.bf16.msra.mxu0 0
    %77 = vmatpush.bf16.msra.mxu0 0
    %78 = vmatpush.bf16.msra.mxu0 0
    %79 = vmatpush.bf16.msra.mxu0 0
    %80 = vmatpush.bf16.msra.mxu0 %v72
    %81 = vmatpush.bf16.msra.mxu0 %v59
    %82 = vmatmul.bf16.gmra.mxu0 %v68
    %v83 = vpop.f32.mrf.mxu0
    %v84 = vadd.f32 %v64, %v83
    %v85 = vpop.f32.mrf.mxu0
    %86 = vdwg.mxu0
    %v87 = vmul.f32 %v84, 0.5
    %v88 = vtanh.pop %v87
    %v89 = vmul.f32 %v88, 0.5
    %v90 = vadd.f32 %v89, 0.5
    %91 = vst.msk [vmem:[#allocation2] sm:$0xff] %vm31, %v90
    // Predicated region
    $region22: #{tpu_custom_call.1} parent=1 // pred_check
      _
    $region23: #{tpu_custom_call.1} parent=1 // pred_check_branch
      %93 = sbr.rel (0) target = $region25
    $region24: #{tpu_custom_call.1} parent=1 // pred_region
      %95 = vsyncadd [#allocation3], 0
      %s97 = sshll.u32 [#allocation2], 4
      %s98 = int_to_ptr.vmem [resolvable:$true] %s97
      %s99 = sshll.u32 %s5, 4
      %s100 = int_to_ptr.hbm [resolvable:$true] %s99
      %102 = dma.vmem_to_hbm [thread:$0]  %s98, 128, %s100, [#allocation3]
    $region25: #{tpu_custom_call.1} parent=1 // pred_fallthru
      _
    // Predicated region
    $region26: #{tpu_custom_call.1} parent=1 // pred_check
      _
    $region27: #{tpu_custom_call.1} parent=1 // pred_check_branch
      %104 = sbr.rel (0) target = $region29
    $region28: #{tpu_custom_call.1} parent=1 // pred_region
      %106 = dma.done [#allocation3], 128
    $region29: #{tpu_custom_call.1} parent=1 // pred_fallthru
      _
    %107 = vsyncpa [#allocation3], 1

</llo_original>
